<compile_context>
chip_gen: v7x
topology: tpu7x:2x2x1
jax: 0.10.0
libtpu: 0.0.40
codegen_flags: <defaults>
</compile_context>

<pallas_src>
import functools

import jax
import jax.numpy as jnp
from jax.experimental import pallas as pl
from jax.experimental.pallas import tpu as pltpu


def mlp_kernel(x_ref, w1_ref, b1_ref, w2_ref, b2_ref, w3_ref, b3_ref, o_ref):
    # Layer 1: Linear(in -> hidden) + ReLU   (Dropout == identity in eval)
    h1 = jnp.dot(x_ref[...], w1_ref[...], preferred_element_type=jnp.float32)
    h1 = jnp.maximum(h1 + b1_ref[...], 0.0)                 # f32 epilogue (VPU)

    # Layer 2: Linear(hidden -> hidden) + ReLU
    h2 = jnp.dot(h1.astype(w2_ref.dtype), w2_ref[...],
                 preferred_element_type=jnp.float32)
    h2 = jnp.maximum(h2 + b2_ref[...], 0.0)                 # f32 epilogue (VPU)

    # Layer 3: Linear(hidden -> out)
    out = jnp.dot(h2.astype(w3_ref.dtype), w3_ref[...],
                  preferred_element_type=jnp.float32)
    o_ref[...] = (out + b3_ref[...]).astype(o_ref.dtype)    # lane-dense store


def _round_up(n, m):
    return ((n + m - 1) // m) * m


def _pad2d(a, rows, cols, dtype):
    a = jnp.asarray(a, dtype)
    return jnp.pad(a, ((0, rows - a.shape[0]), (0, cols - a.shape[1])))


@functools.partial(jax.jit, static_argnames=("lane",))
def mlp_forward(x, w1, b1, w2, b2, w3, b3, *, lane=128):
    """x: [B, C, H, W] (or already-flat [B, F]).  Returns [B, out_channels]."""
    compute_dtype = jnp.bfloat16

    B = x.shape[0]
    x2d = x.reshape(B, -1)                       # == torch x.view(B, -1)
    F = x2d.shape[1]
    Hd = w1.shape[1]
    O = w3.shape[1]

    # Adaptive batch tile: sublane-aligned, capped at 128.
    tb = min(128, _round_up(B, 8))

    # MXU-aligned padded sizes (zeros are inert through Linear + ReLU).
    Bp = _round_up(B, tb)
    Fp = _round_up(F, lane)
    Hp = _round_up(Hd, lane)
    Op = _round_up(O, lane)

    xp = _pad2d(x2d, Bp, Fp, compute_dtype)
    w1p = _pad2d(w1, Fp, Hp, compute_dtype)
    w2p = _pad2d(w2, Hp, Hp, compute_dtype)
    w3p = _pad2d(w3, Hp, Op, compute_dtype)
    b1p = _pad2d(b1.reshape(1, -1), 1, Hp, jnp.float32)
    b2p = _pad2d(b2.reshape(1, -1), 1, Hp, jnp.float32)
    b3p = _pad2d(b3.reshape(1, -1), 1, Op, jnp.float32)

    grid = (Bp // tb,)

    # Weights/biases: same block index every grid step -> VMEM-resident.
    def resident(shape):
        return pl.BlockSpec(shape, lambda i: tuple(0 for _ in shape))

    x_spec = pl.BlockSpec((tb, Fp), lambda i: (i, 0))
    out_spec = pl.BlockSpec((tb, Op), lambda i: (i, 0))

    # VMEM budget: resident bf16 weights + f32 biases, double-buffered x/out
    # tiles, and f32 activation intermediates, with 2x headroom.  Floor at
    # the 32 MiB scoped default, cap at 48 MiB so it fits v7x's 64 MiB VMEM.
    bytes_weights = 2 * (Fp * Hp + Hp * Hp + Hp * Op) + 4 * (2 * Hp + Op)
    bytes_tiles = 2 * (tb * Fp * 2) + 2 * (tb * Op * 4)
    bytes_act = 3 * (tb * Hp * 4)
    vmem_limit = int(min(48 << 20,
                         max(32 << 20,
                             2 * (bytes_weights + bytes_tiles + bytes_act))))

    out_padded = pl.pallas_call(
        mlp_kernel,
        out_shape=jax.ShapeDtypeStruct((Bp, Op), jnp.float32),
        grid_spec=pltpu.PrefetchScalarGridSpec(
            num_scalar_prefetch=0,
            grid=grid,
            in_specs=[
                x_spec,                # x tile (pipelined)
                resident((Fp, Hp)),    # W1
                resident((1, Hp)),     # b1
                resident((Hp, Hp)),    # W2
                resident((1, Hp)),     # b2
                resident((Hp, Op)),    # W3
                resident((1, Op)),     # b3
            ],
            out_specs=out_spec,
        ),
        compiler_params=pltpu.CompilerParams(
            dimension_semantics=("parallel",),
            vmem_limit_bytes=vmem_limit,
        ),
    )(xp, w1p, b1p, w2p, b2p, w3p, b3p)

    return out_padded[:B, :O]


def init_params(key, in_channels, hidden_channels, out_channels):
    """Glorot-uniform weights (pyg.nn.Linear default), zero bias.

    Weights stored as [fan_in, fan_out] so the kernel does x @ W + b
    (equivalent to torch's x @ W_torch.T + b)."""
    def glorot(k, fan_in, fan_out):
        limit = jnp.sqrt(6.0 / (fan_in + fan_out))
        return jax.random.uniform(k, (fan_in, fan_out), jnp.float32,
                                  minval=-limit, maxval=limit)

    k1, k2, k3 = jax.random.split(key, 3)
    w1 = glorot(k1, in_channels, hidden_channels)
    b1 = jnp.zeros((1, hidden_channels), jnp.float32)
    w2 = glorot(k2, hidden_channels, hidden_channels)
    b2 = jnp.zeros((1, hidden_channels), jnp.float32)
    w3 = glorot(k3, hidden_channels, out_channels)
    b3 = jnp.zeros((1, out_channels), jnp.float32)
    return w1, b1, w2, b2, w3, b3


if __name__ == "__main__":
    key = jax.random.PRNGKey(0)
    kx, kp = jax.random.split(key)

    # Small shapes: x is [batch=2, channels=4, spatial=16, spatial=16]
    # -> flattened feature dim F = 4*16*16 = 1024
    B, C, Hs, Ws = 2, 4, 16, 16
    in_channels = C * Hs * Ws
    hidden_channels = 32
    out_channels = 8

    x = jax.random.normal(kx, (B, C, Hs, Ws), jnp.float32)
    params = init_params(kp, in_channels, hidden_channels, out_channels)

    out = mlp_forward(x, *params)
    jax.block_until_ready(out)
    assert out.shape == (B, out_channels)

    # Pure-JAX reference with the same bf16-operand / f32-accumulate recipe.
    x2d = x.reshape(B, -1).astype(jnp.bfloat16)
    w1, b1, w2, b2, w3, b3 = params
    h = jnp.dot(x2d, w1.astype(jnp.bfloat16),
                preferred_element_type=jnp.float32)
    h = jnp.maximum(h + b1, 0.0)
    h = jnp.dot(h.astype(jnp.bfloat16), w2.astype(jnp.bfloat16),
                preferred_element_type=jnp.float32)
    h = jnp.maximum(h + b2, 0.0)
    ref = jnp.dot(h.astype(jnp.bfloat16), w3.astype(jnp.bfloat16),
                  preferred_element_type=jnp.float32) + b3

    assert jnp.allclose(out, ref, atol=1e-2, rtol=1e-2), (
        f"max abs err {jnp.max(jnp.abs(out - ref))}")

    print("KERNEL_OK")
</pallas_src>

<mosaic_0001>
module attributes {stable_mosaic.version = 11 : i64} {
  func.func @mlp_kernel(%arg0: i32, %arg1: memref<8x1024xbf16, #tpu.memory_space<vmem>>, %arg2: memref<1024x128xbf16, #tpu.memory_space<vmem>>, %arg3: memref<1x128xf32, #tpu.memory_space<vmem>>, %arg4: memref<128x128xbf16, #tpu.memory_space<vmem>>, %arg5: memref<1x128xf32, #tpu.memory_space<vmem>>, %arg6: memref<128x128xbf16, #tpu.memory_space<vmem>>, %arg7: memref<1x128xf32, #tpu.memory_space<vmem>>, %arg8: memref<8x128xf32, #tpu.memory_space<vmem>>) attributes {dimension_semantics = [#tpu.dimension_semantics<parallel>], iteration_bounds = array<i64: 1>, scalar_prefetch = 0 : i64, scratch_operands = 0 : i64, tpu.core_type = #tpu.core_type<tc>, window_params = [{transform_indices = @transform_0, window_bounds = array<i64: 8, 1024>}, {pipeline_mode = #tpu.pipeline_mode<synchronous>, transform_indices = @transform_1, window_bounds = array<i64: 1024, 128>}, {pipeline_mode = #tpu.pipeline_mode<synchronous>, transform_indices = @transform_2, window_bounds = array<i64: 1, 128>}, {pipeline_mode = #tpu.pipeline_mode<synchronous>, transform_indices = @transform_3, window_bounds = array<i64: 128, 128>}, {pipeline_mode = #tpu.pipeline_mode<synchronous>, transform_indices = @transform_4, window_bounds = array<i64: 1, 128>}, {pipeline_mode = #tpu.pipeline_mode<synchronous>, transform_indices = @transform_5, window_bounds = array<i64: 128, 128>}, {pipeline_mode = #tpu.pipeline_mode<synchronous>, transform_indices = @transform_6, window_bounds = array<i64: 1, 128>}, {transform_indices = @transform_7, window_bounds = array<i64: 8, 128>}]} {
    %c0 = arith.constant 0 : index
    %c0_0 = arith.constant 0 : index
    %0 = vector.load %arg1[%c0, %c0_0] : memref<8x1024xbf16, #tpu.memory_space<vmem>>, vector<8x1024xbf16>
    %c0_1 = arith.constant 0 : index
    %c0_2 = arith.constant 0 : index
    %1 = vector.load %arg2[%c0_1, %c0_2] : memref<1024x128xbf16, #tpu.memory_space<vmem>>, vector<1024x128xbf16>
    %cst = arith.constant dense<0.000000e+00> : vector<8x128xf32>
    %2 = tpu.matmul %0, %1, %cst {dimension_numbers = #tpu.dot_dimension_numbers<[1], [0], [0], [1], [0, 0, 1, 1], [], []>} : vector<8x1024xbf16>, vector<1024x128xbf16>, vector<8x128xf32> -> vector<8x128xf32>
    %c0_3 = arith.constant 0 : index
    %c0_4 = arith.constant 0 : index
    %3 = vector.load %arg3[%c0_3, %c0_4] : memref<1x128xf32, #tpu.memory_space<vmem>>, vector<1x128xf32>
    %4 = vector.broadcast %3 : vector<1x128xf32> to vector<8x128xf32>
    %5 = arith.addf %2, %4 : vector<8x128xf32>
    %cst_5 = arith.constant 0.000000e+00 : f32
    %6 = vector.broadcast %cst_5 : f32 to vector<8x128xf32>
    %7 = arith.maximumf %5, %6 : vector<8x128xf32>
    %8 = arith.truncf %7 : vector<8x128xf32> to vector<8x128xbf16>
    %c0_6 = arith.constant 0 : index
    %c0_7 = arith.constant 0 : index
    %9 = vector.load %arg4[%c0_6, %c0_7] : memref<128x128xbf16, #tpu.memory_space<vmem>>, vector<128x128xbf16>
    %cst_8 = arith.constant dense<0.000000e+00> : vector<8x128xf32>
    %10 = tpu.matmul %8, %9, %cst_8 {dimension_numbers = #tpu.dot_dimension_numbers<[1], [0], [0], [1], [0, 0, 1, 1], [], []>} : vector<8x128xbf16>, vector<128x128xbf16>, vector<8x128xf32> -> vector<8x128xf32>
    %c0_9 = arith.constant 0 : index
    %c0_10 = arith.constant 0 : index
    %11 = vector.load %arg5[%c0_9, %c0_10] : memref<1x128xf32, #tpu.memory_space<vmem>>, vector<1x128xf32>
    %12 = vector.broadcast %11 : vector<1x128xf32> to vector<8x128xf32>
    %13 = arith.addf %10, %12 : vector<8x128xf32>
    %cst_11 = arith.constant 0.000000e+00 : f32
    %14 = vector.broadcast %cst_11 : f32 to vector<8x128xf32>
    %15 = arith.maximumf %13, %14 : vector<8x128xf32>
    %16 = arith.truncf %15 : vector<8x128xf32> to vector<8x128xbf16>
    %c0_12 = arith.constant 0 : index
    %c0_13 = arith.constant 0 : index
    %17 = vector.load %arg6[%c0_12, %c0_13] : memref<128x128xbf16, #tpu.memory_space<vmem>>, vector<128x128xbf16>
    %cst_14 = arith.constant dense<0.000000e+00> : vector<8x128xf32>
    %18 = tpu.matmul %16, %17, %cst_14 {dimension_numbers = #tpu.dot_dimension_numbers<[1], [0], [0], [1], [0, 0, 1, 1], [], []>} : vector<8x128xbf16>, vector<128x128xbf16>, vector<8x128xf32> -> vector<8x128xf32>
    %c0_15 = arith.constant 0 : index
    %c0_16 = arith.constant 0 : index
    %19 = vector.load %arg7[%c0_15, %c0_16] : memref<1x128xf32, #tpu.memory_space<vmem>>, vector<1x128xf32>
    %20 = vector.broadcast %19 : vector<1x128xf32> to vector<8x128xf32>
    %21 = arith.addf %18, %20 : vector<8x128xf32>
    %c0_17 = arith.constant 0 : index
    %c0_18 = arith.constant 0 : index
    %22 = vector.load %arg8[%c0_17, %c0_18] : memref<8x128xf32, #tpu.memory_space<vmem>>, vector<8x128xf32>
    tpu.vector_store %arg8[%c0_17, %c0_18], %21 {strides = array<i32>} : memref<8x128xf32, #tpu.memory_space<vmem>>, vector<8x128xf32>,
    return
  }
  func.func @transform_0(%arg0: i32) -> (i32, i32) {
    %c0_i32 = arith.constant 0 : i32
    %c0_i32_0 = arith.constant 0 : i32
    return %arg0, %c0_i32 : i32, i32
  }
  func.func @transform_1(%arg0: i32) -> (i32, i32) {
    %c0_i32 = arith.constant 0 : i32
    %c0_i32_0 = arith.constant 0 : i32
    %c0_i32_1 = arith.constant 0 : i32
    return %c0_i32, %c0_i32_0 : i32, i32
  }
  func.func @transform_2(%arg0: i32) -> (i32, i32) {
    %c0_i32 = arith.constant 0 : i32
    %c0_i32_0 = arith.constant 0 : i32
    %c0_i32_1 = arith.constant 0 : i32
    return %c0_i32, %c0_i32_0 : i32, i32
  }
  func.func @transform_3(%arg0: i32) -> (i32, i32) {
    %c0_i32 = arith.constant 0 : i32
    %c0_i32_0 = arith.constant 0 : i32
    %c0_i32_1 = arith.constant 0 : i32
    return %c0_i32, %c0_i32_0 : i32, i32
  }
  func.func @transform_4(%arg0: i32) -> (i32, i32) {
    %c0_i32 = arith.constant 0 : i32
    %c0_i32_0 = arith.constant 0 : i32
    %c0_i32_1 = arith.constant 0 : i32
    return %c0_i32, %c0_i32_0 : i32, i32
  }
  func.func @transform_5(%arg0: i32) -> (i32, i32) {
    %c0_i32 = arith.constant 0 : i32
    %c0_i32_0 = arith.constant 0 : i32
    %c0_i32_1 = arith.constant 0 : i32
    return %c0_i32, %c0_i32_0 : i32, i32
  }
  func.func @transform_6(%arg0: i32) -> (i32, i32) {
    %c0_i32 = arith.constant 0 : i32
    %c0_i32_0 = arith.constant 0 : i32
    %c0_i32_1 = arith.constant 0 : i32
    return %c0_i32, %c0_i32_0 : i32, i32
  }
  func.func @transform_7(%arg0: i32) -> (i32, i32) {
    %c0_i32 = arith.constant 0 : i32
    %c0_i32_0 = arith.constant 0 : i32
    return %arg0, %c0_i32 : i32, i32
  }
}

</mosaic_0001>

<llo_original>
// kernel: mlp_forward.1
$region0: #{mlp_forward.1}
  #allocation0 [shape = 'u32[]', space=smem, size = 0x4, offset = 0x4, fixed_abs, tag = 'smem constant byte address 0x4 - core index']
  #allocation1 [shape = 'u32[144,128]{1,0:T(1,128)}', space=vmem, size = 0x12000, scoped, tag = 'internal scratch']
  %s0 = inlined_call_operand.vmem [shape: bf16[8,1024], index: 0, kind: input, shape index: {}]
  %s1 = inlined_call_operand.vmem [shape: bf16[1024,128], index: 1, kind: input, shape index: {}]
  %s2 = inlined_call_operand.vmem [shape: f32[1,128], index: 2, kind: input, shape index: {}]
  %s3 = inlined_call_operand.vmem [shape: bf16[128,128], index: 3, kind: input, shape index: {}]
  %s4 = inlined_call_operand.vmem [shape: f32[1,128], index: 4, kind: input, shape index: {}]
  %s5 = inlined_call_operand.vmem [shape: bf16[128,128], index: 5, kind: input, shape index: {}]
  %s6 = inlined_call_operand.vmem [shape: f32[1,128], index: 6, kind: input, shape index: {}]
  %s7 = inlined_call_operand.vmem [shape: f32[8,128], index: 7, kind: output, shape index: {}]
  %s8 = sld [smem:[#allocation0]]
  $region38: #{mlp_forward.1} parent=0
    _
  %s10 = ssub.s32 1, %s8
  %s11 = scalar_select 0, %s10, %s8
  // Predicated region
  $region2: #{mlp_forward.1} parent=0 // pred_check
    _
  $region3: #{mlp_forward.1} parent=0 // pred_check_branch
    %13 = sbr.rel (0) target = $region5
  $region4: #{mlp_forward.1} parent=0 // pred_region
    _
  $region5: #{mlp_forward.1} parent=0 // pred_fallthru
    _
  // Predicated region
  $region6: #{mlp_forward.1} parent=0 // pred_check
    _
  $region7: #{mlp_forward.1} parent=0 // pred_check_branch
    %15 = sbr.rel (0) target = $region9
  $region8: #{mlp_forward.1} parent=0 // pred_region
    _
  $region9: #{mlp_forward.1} parent=0 // pred_fallthru
    _
  // Predicated region
  $region10: #{mlp_forward.1} parent=0 // pred_check
    _
  $region11: #{mlp_forward.1} parent=0 // pred_check_branch
    %17 = sbr.rel (0) target = $region13
  $region12: #{mlp_forward.1} parent=0 // pred_region
    _
  $region13: #{mlp_forward.1} parent=0 // pred_fallthru
    _
  // Predicated region
  $region14: #{mlp_forward.1} parent=0 // pred_check
    _
  $region15: #{mlp_forward.1} parent=0 // pred_check_branch
    %19 = sbr.rel (0) target = $region17
  $region16: #{mlp_forward.1} parent=0 // pred_region
    _
  $region17: #{mlp_forward.1} parent=0 // pred_fallthru
    _
  // Predicated region
  $region18: #{mlp_forward.1} parent=0 // pred_check
    _
  $region19: #{mlp_forward.1} parent=0 // pred_check_branch
    %21 = sbr.rel (0) target = $region21
  $region20: #{mlp_forward.1} parent=0 // pred_region
    _
  $region21: #{mlp_forward.1} parent=0 // pred_fallthru
    _
  // Predicated region
  $region22: #{mlp_forward.1} parent=0 // pred_check
    _
  $region23: #{mlp_forward.1} parent=0 // pred_check_branch
    %23 = sbr.rel (0) target = $region25
  $region24: #{mlp_forward.1} parent=0 // pred_region
    _
  $region25: #{mlp_forward.1} parent=0 // pred_fallthru
    _
  // Predicated region
  $region26: #{mlp_forward.1} parent=0 // pred_check
    _
  $region27: #{mlp_forward.1} parent=0 // pred_check_branch
    %25 = sbr.rel (0) target = $region29
  $region28: #{mlp_forward.1} parent=0 // pred_region
    _
  $region29: #{mlp_forward.1} parent=0 // pred_fallthru
    _
  %v27 = vld [vmem:[%s0] sm:$0xff]
  %v28 = vld [vmem:[%s0 + $0x8] sm:$0xff]
  %v29 = vld [vmem:[%s0 + $0x10] sm:$0xff]
  %v30 = vld [vmem:[%s0 + $0x18] sm:$0xff]
  %v31 = vld [vmem:[%s1] sm:$0xf]
  %v32 = vld [vmem:[%s1 + $0x4] sm:$0xf]
  %v33 = vld [vmem:[%s1 + $0x8] sm:$0xf]
  %v34 = vld [vmem:[%s1 + $0xc] sm:$0xf]
  %v35 = vld [vmem:[%s1 + $0x10] sm:$0xf]
  %v36 = vld [vmem:[%s1 + $0x14] sm:$0xf]
  %v37 = vld [vmem:[%s1 + $0x18] sm:$0xf]
  %v38 = vld [vmem:[%s1 + $0x1c] sm:$0xf]
  %v39 = vld [vmem:[%s1 + $0x20] sm:$0xf]
  %v40 = vld [vmem:[%s1 + $0x24] sm:$0xf]
  %v41 = vld [vmem:[%s1 + $0x28] sm:$0xf]
  %v42 = vld [vmem:[%s1 + $0x2c] sm:$0xf]
  %v43 = vld [vmem:[%s1 + $0x30] sm:$0xf]
  %v44 = vld [vmem:[%s1 + $0x34] sm:$0xf]
  %v45 = vld [vmem:[%s1 + $0x38] sm:$0xf]
  %v46 = vld [vmem:[%s1 + $0x3c] sm:$0xf]
  %v47 = vld [vmem:[%s1 + $0x40] sm:$0xf]
  %v48 = vld [vmem:[%s1 + $0x44] sm:$0xf]
  %v49 = vld [vmem:[%s1 + $0x48] sm:$0xf]
  %v50 = vld [vmem:[%s1 + $0x4c] sm:$0xf]
  %v51 = vld [vmem:[%s1 + $0x50] sm:$0xf]
  %v52 = vld [vmem:[%s1 + $0x54] sm:$0xf]
  %v53 = vld [vmem:[%s1 + $0x58] sm:$0xf]
  %v54 = vld [vmem:[%s1 + $0x5c] sm:$0xf]
  %v55 = vld [vmem:[%s1 + $0x60] sm:$0xf]
  %v56 = vld [vmem:[%s1 + $0x64] sm:$0xf]
  %v57 = vld [vmem:[%s1 + $0x68] sm:$0xf]
  %v58 = vld [vmem:[%s1 + $0x6c] sm:$0xf]
  %v59 = vld [vmem:[%s1 + $0x70] sm:$0xf]
  %v60 = vld [vmem:[%s1 + $0x74] sm:$0xf]
  %v61 = vld [vmem:[%s1 + $0x78] sm:$0xf]
  %v62 = vld [vmem:[%s1 + $0x7c] sm:$0xf]
  %v63 = vld [vmem:[%s1 + $0x80] sm:$0xf]
  %v64 = vld [vmem:[%s1 + $0x84] sm:$0xf]
  %v65 = vld [vmem:[%s1 + $0x88] sm:$0xf]
  %v66 = vld [vmem:[%s1 + $0x8c] sm:$0xf]
  %v67 = vld [vmem:[%s1 + $0x90] sm:$0xf]
  %v68 = vld [vmem:[%s1 + $0x94] sm:$0xf]
  %v69 = vld [vmem:[%s1 + $0x98] sm:$0xf]
  %v70 = vld [vmem:[%s1 + $0x9c] sm:$0xf]
  %v71 = vld [vmem:[%s1 + $0xa0] sm:$0xf]
  %v72 = vld [vmem:[%s1 + $0xa4] sm:$0xf]
  %v73 = vld [vmem:[%s1 + $0xa8] sm:$0xf]
  %v74 = vld [vmem:[%s1 + $0xac] sm:$0xf]
  %v75 = vld [vmem:[%s1 + $0xb0] sm:$0xf]
  %v76 = vld [vmem:[%s1 + $0xb4] sm:$0xf]
  %v77 = vld [vmem:[%s1 + $0xb8] sm:$0xf]
  %v78 = vld [vmem:[%s1 + $0xbc] sm:$0xf]
  %v79 = vld [vmem:[%s1 + $0xc0] sm:$0xf]
  %v80 = vld [vmem:[%s1 + $0xc4] sm:$0xf]
  %v81 = vld [vmem:[%s1 + $0xc8] sm:$0xf]
  %v82 = vld [vmem:[%s1 + $0xcc] sm:$0xf]
  %v83 = vld [vmem:[%s1 + $0xd0] sm:$0xf]
  %v84 = vld [vmem:[%s1 + $0xd4] sm:$0xf]
  %v85 = vld [vmem:[%s1 + $0xd8] sm:$0xf]
  %v86 = vld [vmem:[%s1 + $0xdc] sm:$0xf]
  %v87 = vld [vmem:[%s1 + $0xe0] sm:$0xf]
  %v88 = vld [vmem:[%s1 + $0xe4] sm:$0xf]
  %v89 = vld [vmem:[%s1 + $0xe8] sm:$0xf]
  %v90 = vld [vmem:[%s1 + $0xec] sm:$0xf]
  %v91 = vld [vmem:[%s1 + $0xf0] sm:$0xf]
  %v92 = vld [vmem:[%s1 + $0xf4] sm:$0xf]
  %v93 = vld [vmem:[%s1 + $0xf8] sm:$0xf]
  %v94 = vld [vmem:[%s1 + $0xfc] sm:$0xf]
  %v95 = vld [vmem:[%s1 + $0x100] sm:$0xf]
  %v96 = vld [vmem:[%s1 + $0x104] sm:$0xf]
  %v97 = vld [vmem:[%s1 + $0x108] sm:$0xf]
  %v98 = vld [vmem:[%s1 + $0x10c] sm:$0xf]
  %v99 = vld [vmem:[%s1 + $0x110] sm:$0xf]
  %v100 = vld [vmem:[%s1 + $0x114] sm:$0xf]
  %v101 = vld [vmem:[%s1 + $0x118] sm:$0xf]
  %v102 = vld [vmem:[%s1 + $0x11c] sm:$0xf]
  %v103 = vld [vmem:[%s1 + $0x120] sm:$0xf]
  %v104 = vld [vmem:[%s1 + $0x124] sm:$0xf]
  %v105 = vld [vmem:[%s1 + $0x128] sm:$0xf]
  %v106 = vld [vmem:[%s1 + $0x12c] sm:$0xf]
  %v107 = vld [vmem:[%s1 + $0x130] sm:$0xf]
  %v108 = vld [vmem:[%s1 + $0x134] sm:$0xf]
  %v109 = vld [vmem:[%s1 + $0x138] sm:$0xf]
  %v110 = vld [vmem:[%s1 + $0x13c] sm:$0xf]
  %v111 = vld [vmem:[%s1 + $0x140] sm:$0xf]
  %v112 = vld [vmem:[%s1 + $0x144] sm:$0xf]
  %v113 = vld [vmem:[%s1 + $0x148] sm:$0xf]
  %v114 = vld [vmem:[%s1 + $0x14c] sm:$0xf]
  %v115 = vld [vmem:[%s1 + $0x150] sm:$0xf]
  %v116 = vld [vmem:[%s1 + $0x154] sm:$0xf]
  %v117 = vld [vmem:[%s1 + $0x158] sm:$0xf]
  %v118 = vld [vmem:[%s1 + $0x15c] sm:$0xf]
  %v119 = vld [vmem:[%s1 + $0x160] sm:$0xf]
  %v120 = vld [vmem:[%s1 + $0x164] sm:$0xf]
  %v121 = vld [vmem:[%s1 + $0x168] sm:$0xf]
  %v122 = vld [vmem:[%s1 + $0x16c] sm:$0xf]
  %v123 = vld [vmem:[%s1 + $0x170] sm:$0xf]
  %v124 = vld [vmem:[%s1 + $0x174] sm:$0xf]
  %v125 = vld [vmem:[%s1 + $0x178] sm:$0xf]
  %v126 = vld [vmem:[%s1 + $0x17c] sm:$0xf]
  %v127 = vld [vmem:[%s1 + $0x180] sm:$0xf]
  %v128 = vld [vmem:[%s1 + $0x184] sm:$0xf]
  %v129 = vld [vmem:[%s1 + $0x188] sm:$0xf]
  %v130 = vld [vmem:[%s1 + $0x18c] sm:$0xf]
  %v131 = vld [vmem:[%s1 + $0x190] sm:$0xf]
  %v132 = vld [vmem:[%s1 + $0x194] sm:$0xf]
  %v133 = vld [vmem:[%s1 + $0x198] sm:$0xf]
  %v134 = vld [vmem:[%s1 + $0x19c] sm:$0xf]
  %v135 = vld [vmem:[%s1 + $0x1a0] sm:$0xf]
  %v136 = vld [vmem:[%s1 + $0x1a4] sm:$0xf]
  %v137 = vld [vmem:[%s1 + $0x1a8] sm:$0xf]
  %v138 = vld [vmem:[%s1 + $0x1ac] sm:$0xf]
  %v139 = vld [vmem:[%s1 + $0x1b0] sm:$0xf]
  %v140 = vld [vmem:[%s1 + $0x1b4] sm:$0xf]
  %v141 = vld [vmem:[%s1 + $0x1b8] sm:$0xf]
  %v142 = vld [vmem:[%s1 + $0x1bc] sm:$0xf]
  %v143 = vld [vmem:[%s1 + $0x1c0] sm:$0xf]
  %v144 = vld [vmem:[%s1 + $0x1c4] sm:$0xf]
  %v145 = vld [vmem:[%s1 + $0x1c8] sm:$0xf]
  %v146 = vld [vmem:[%s1 + $0x1cc] sm:$0xf]
  %v147 = vld [vmem:[%s1 + $0x1d0] sm:$0xf]
  %v148 = vld [vmem:[%s1 + $0x1d4] sm:$0xf]
  %v149 = vld [vmem:[%s1 + $0x1d8] sm:$0xf]
  %v150 = vld [vmem:[%s1 + $0x1dc] sm:$0xf]
  %v151 = vld [vmem:[%s1 + $0x1e0] sm:$0xf]
  %v152 = vld [vmem:[%s1 + $0x1e4] sm:$0xf]
  %v153 = vld [vmem:[%s1 + $0x1e8] sm:$0xf]
  %v154 = vld [vmem:[%s1 + $0x1ec] sm:$0xf]
  %v155 = vld [vmem:[%s1 + $0x1f0] sm:$0xf]
  %v156 = vld [vmem:[%s1 + $0x1f4] sm:$0xf]
  %v157 = vld [vmem:[%s1 + $0x1f8] sm:$0xf]
  %v158 = vld [vmem:[%s1 + $0x1fc] sm:$0xf]
  %v159 = vld [vmem:[%s2] sm:$0x1]
  %v161 = vlaneseq
  %v162 = vshrl.u32 %v161, 7
  %v163 = vsub.s32 0, %v162
  %v164 = vrot.slane %v159, %v163
  %v170 = vunpack.c.l.b16 %v27
  %v171 = vunpack.c.h.b16 %v27
  %v172 = vunpack.c.l.b16 %v28
  %v173 = vunpack.c.h.b16 %v28
  %v174 = vunpack.c.l.b16 %v29
  %v175 = vunpack.c.h.b16 %v29
  %v176 = vunpack.c.l.b16 %v30
  %v177 = vunpack.c.h.b16 %v30
  %v178 = vpack.c.b16 %v170, %v170
  %v179 = vpack.c.b16 %v171, %v171
  %v180 = vpack.c.b16 %v172, %v172
  %v181 = vpack.c.b16 %v173, %v173
  %v182 = vpack.c.b16 %v174, %v174
  %v183 = vpack.c.b16 %v175, %v175
  %v184 = vpack.c.b16 %v176, %v176
  %v185 = vpack.c.b16 %v177, %v177
  %v322 = vunpack.c.l.b16 %v31
  %v323 = vunpack.c.l.b16 %v32
  %v324 = vunpack.c.l.b16 %v33
  %v325 = vunpack.c.l.b16 %v34
  %v326 = vunpack.c.l.b16 %v35
  %v327 = vunpack.c.l.b16 %v36
  %v328 = vunpack.c.l.b16 %v37
  %v329 = vunpack.c.l.b16 %v38
  %v330 = vunpack.c.l.b16 %v39
  %v331 = vunpack.c.l.b16 %v40
  %v332 = vunpack.c.l.b16 %v41
  %v333 = vunpack.c.l.b16 %v42
  %v334 = vunpack.c.l.b16 %v43
  %v335 = vunpack.c.l.b16 %v44
  %v336 = vunpack.c.l.b16 %v45
  %v337 = vunpack.c.l.b16 %v46
  %v338 = vunpack.c.l.b16 %v47
  %v339 = vunpack.c.l.b16 %v48
  %v340 = vunpack.c.l.b16 %v49
  %v341 = vunpack.c.l.b16 %v50
  %v342 = vunpack.c.l.b16 %v51
  %v343 = vunpack.c.l.b16 %v52
  %v344 = vunpack.c.l.b16 %v53
  %v345 = vunpack.c.l.b16 %v54
  %v346 = vunpack.c.l.b16 %v55
  %v347 = vunpack.c.l.b16 %v56
  %v348 = vunpack.c.l.b16 %v57
  %v349 = vunpack.c.l.b16 %v58
  %v350 = vunpack.c.l.b16 %v59
  %v351 = vunpack.c.l.b16 %v60
  %v352 = vunpack.c.l.b16 %v61
  %v353 = vunpack.c.l.b16 %v62
  %v354 = vunpack.c.l.b16 %v63
  %v355 = vunpack.c.l.b16 %v64
  %v356 = vunpack.c.l.b16 %v65
  %v357 = vunpack.c.l.b16 %v66
  %v358 = vunpack.c.l.b16 %v67
  %v359 = vunpack.c.l.b16 %v68
  %v360 = vunpack.c.l.b16 %v69
  %v361 = vunpack.c.l.b16 %v70
  %v362 = vunpack.c.l.b16 %v71
  %v363 = vunpack.c.l.b16 %v72
  %v364 = vunpack.c.l.b16 %v73
  %v365 = vunpack.c.l.b16 %v74
  %v366 = vunpack.c.l.b16 %v75
  %v367 = vunpack.c.l.b16 %v76
  %v368 = vunpack.c.l.b16 %v77
  %v369 = vunpack.c.l.b16 %v78
  %v370 = vunpack.c.l.b16 %v79
  %v371 = vunpack.c.l.b16 %v80
  %v372 = vunpack.c.l.b16 %v81
  %v373 = vunpack.c.l.b16 %v82
  %v374 = vunpack.c.l.b16 %v83
  %v375 = vunpack.c.l.b16 %v84
  %v376 = vunpack.c.l.b16 %v85
  %v377 = vunpack.c.l.b16 %v86
  %v378 = vunpack.c.l.b16 %v87
  %v379 = vunpack.c.l.b16 %v88
  %v380 = vunpack.c.l.b16 %v89
  %v381 = vunpack.c.l.b16 %v90
  %v382 = vunpack.c.l.b16 %v91
  %v383 = vunpack.c.l.b16 %v92
  %v384 = vunpack.c.l.b16 %v93
  %v385 = vunpack.c.l.b16 %v94
  %v386 = vunpack.c.l.b16 %v95
  %v387 = vunpack.c.l.b16 %v96
  %v388 = vunpack.c.l.b16 %v97
  %v389 = vunpack.c.l.b16 %v98
  %v390 = vunpack.c.l.b16 %v99
  %v391 = vunpack.c.l.b16 %v100
  %v392 = vunpack.c.l.b16 %v101
  %v393 = vunpack.c.l.b16 %v102
  %v394 = vunpack.c.l.b16 %v103
  %v395 = vunpack.c.l.b16 %v104
  %v396 = vunpack.c.l.b16 %v105
  %v397 = vunpack.c.l.b16 %v106
  %v398 = vunpack.c.l.b16 %v107
  %v399 = vunpack.c.l.b16 %v108
  %v400 = vunpack.c.l.b16 %v109
  %v401 = vunpack.c.l.b16 %v110
  %v402 = vunpack.c.l.b16 %v111
  %v403 = vunpack.c.l.b16 %v112
  %v404 = vunpack.c.l.b16 %v113
  %v405 = vunpack.c.l.b16 %v114
  %v406 = vunpack.c.l.b16 %v115
  %v407 = vunpack.c.l.b16 %v116
  %v408 = vunpack.c.l.b16 %v117
  %v409 = vunpack.c.l.b16 %v118
  %v410 = vunpack.c.l.b16 %v119
  %v411 = vunpack.c.l.b16 %v120
  %v412 = vunpack.c.l.b16 %v121
  %v413 = vunpack.c.l.b16 %v122
  %v414 = vunpack.c.l.b16 %v123
  %v415 = vunpack.c.l.b16 %v124
  %v416 = vunpack.c.l.b16 %v125
  %v417 = vunpack.c.l.b16 %v126
  %v418 = vunpack.c.l.b16 %v127
  %v419 = vunpack.c.l.b16 %v128
  %v420 = vunpack.c.l.b16 %v129
  %v421 = vunpack.c.l.b16 %v130
  %v422 = vunpack.c.l.b16 %v131
  %v423 = vunpack.c.l.b16 %v132
  %v424 = vunpack.c.l.b16 %v133
  %v425 = vunpack.c.l.b16 %v134
  %v426 = vunpack.c.l.b16 %v135
  %v427 = vunpack.c.l.b16 %v136
  %v428 = vunpack.c.l.b16 %v137
  %v429 = vunpack.c.l.b16 %v138
  %v430 = vunpack.c.l.b16 %v139
  %v431 = vunpack.c.l.b16 %v140
  %v432 = vunpack.c.l.b16 %v141
  %v433 = vunpack.c.l.b16 %v142
  %v434 = vunpack.c.l.b16 %v143
  %v435 = vunpack.c.l.b16 %v144
  %v436 = vunpack.c.l.b16 %v145
  %v437 = vunpack.c.l.b16 %v146
  %v438 = vunpack.c.l.b16 %v147
  %v439 = vunpack.c.l.b16 %v148
  %v440 = vunpack.c.l.b16 %v149
  %v441 = vunpack.c.l.b16 %v150
  %v442 = vunpack.c.l.b16 %v151
  %v443 = vunpack.c.l.b16 %v152
  %v444 = vunpack.c.l.b16 %v153
  %v445 = vunpack.c.l.b16 %v154
  %v446 = vunpack.c.l.b16 %v155
  %v447 = vunpack.c.l.b16 %v156
  %v448 = vunpack.c.l.b16 %v157
  %v449 = vunpack.c.l.b16 %v158
  %v450 = vpack.c.b16 %v323, %v322
  %v451 = vpack.c.b16 %v325, %v324
  %v452 = vpack.c.b16 %v327, %v326
  %v453 = vpack.c.b16 %v329, %v328
  %v454 = vpack.c.b16 %v331, %v330
  %v455 = vpack.c.b16 %v333, %v332
  %v456 = vpack.c.b16 %v335, %v334
  %v457 = vpack.c.b16 %v337, %v336
  %v458 = vpack.c.b16 %v339, %v338
  %v459 = vpack.c.b16 %v341, %v340
  %v460 = vpack.c.b16 %v343, %v342
  %v461 = vpack.c.b16 %v345, %v344
  %v462 = vpack.c.b16 %v347, %v346
  %v463 = vpack.c.b16 %v349, %v348
  %v464 = vpack.c.b16 %v351, %v350
  %v465 = vpack.c.b16 %v353, %v352
  %v466 = vpack.c.b16 %v355, %v354
  %v467 = vpack.c.b16 %v357, %v356
  %v468 = vpack.c.b16 %v359, %v358
  %v469 = vpack.c.b16 %v361, %v360
  %v470 = vpack.c.b16 %v363, %v362
  %v471 = vpack.c.b16 %v365, %v364
  %v472 = vpack.c.b16 %v367, %v366
  %v473 = vpack.c.b16 %v369, %v368
  %v474 = vpack.c.b16 %v371, %v370
  %v475 = vpack.c.b16 %v373, %v372
  %v476 = vpack.c.b16 %v375, %v374
  %v477 = vpack.c.b16 %v377, %v376
  %v478 = vpack.c.b16 %v379, %v378
  %v479 = vpack.c.b16 %v381, %v380
  %v480 = vpack.c.b16 %v383, %v382
  %v481 = vpack.c.b16 %v385, %v384
  %v482 = vpack.c.b16 %v387, %v386
  %v483 = vpack.c.b16 %v389, %v388
  %v484 = vpack.c.b16 %v391, %v390
  %v485 = vpack.c.b16 %v393, %v392
  %v486 = vpack.c.b16 %v395, %v394
  %v487 = vpack.c.b16 %v397, %v396
  %v488 = vpack.c.b16 %v399, %v398
  %v489 = vpack.c.b16 %v401, %v400
  %v490 = vpack.c.b16 %v403, %v402
  %v491 = vpack.c.b16 %v405, %v404
  %v492 = vpack.c.b16 %v407, %v406
  %v493 = vpack.c.b16 %v409, %v408
  %v494 = vpack.c.b16 %v411, %v410
  %v495 = vpack.c.b16 %v413, %v412
  %v496 = vpack.c.b16 %v415, %v414
  %v497 = vpack.c.b16 %v417, %v416
  %v498 = vpack.c.b16 %v419, %v418
  %v499 = vpack.c.b16 %v421, %v420
  %v500 = vpack.c.b16 %v423, %v422
  %v501 = vpack.c.b16 %v425, %v424
  %v502 = vpack.c.b16 %v427, %v426
  %v503 = vpack.c.b16 %v429, %v428
  %v504 = vpack.c.b16 %v431, %v430
  %v505 = vpack.c.b16 %v433, %v432
  %v506 = vpack.c.b16 %v435, %v434
  %v507 = vpack.c.b16 %v437, %v436
  %v508 = vpack.c.b16 %v439, %v438
  %v509 = vpack.c.b16 %v441, %v440
  %v510 = vpack.c.b16 %v443, %v442
  %v511 = vpack.c.b16 %v445, %v444
  %v512 = vpack.c.b16 %v447, %v446
  %v513 = vpack.c.b16 %v449, %v448
  %578 = vmatprep.subr.bf16.mxu0 0
  %579 = vmatpush1.bf16.msra.mxu0 %v450
  %580 = vmatprep.subr.bf16.mxu0 0
  %581 = vmatpush1.bf16.msra.mxu0 %v451
  %582 = vmatprep.subr.bf16.mxu0 0
  %583 = vmatpush1.bf16.msra.mxu0 %v452
  %584 = vmatprep.subr.bf16.mxu0 0
  %585 = vmatpush1.bf16.msra.mxu0 %v453
  %586 = vmatprep.subr.bf16.mxu0 0
  %587 = vmatpush1.bf16.msra.mxu0 %v454
  %588 = vmatprep.subr.bf16.mxu0 0
  %589 = vmatpush1.bf16.msra.mxu0 %v455
  %590 = vmatprep.subr.bf16.mxu0 0
  %591 = vmatpush1.bf16.msra.mxu0 %v456
  %592 = vmatprep.subr.bf16.mxu0 0
  %593 = vmatpush1.bf16.msra.mxu0 %v457
  %594 = vmatprep.subr.bf16.mxu0 0
  %595 = vmatpush1.bf16.msra.mxu0 %v458
  %596 = vmatprep.subr.bf16.mxu0 0
  %597 = vmatpush1.bf16.msra.mxu0 %v459
  %598 = vmatprep.subr.bf16.mxu0 0
  %599 = vmatpush1.bf16.msra.mxu0 %v460
  %600 = vmatprep.subr.bf16.mxu0 0
  %601 = vmatpush1.bf16.msra.mxu0 %v461
  %602 = vmatprep.subr.bf16.mxu0 0
  %603 = vmatpush1.bf16.msra.mxu0 %v462
  %604 = vmatprep.subr.bf16.mxu0 0
  %605 = vmatpush1.bf16.msra.mxu0 %v463
  %606 = vmatprep.subr.bf16.mxu0 0
  %607 = vmatpush1.bf16.msra.mxu0 %v464
  %608 = vmatprep.subr.bf16.mxu0 0
  %609 = vmatpush1.bf16.msra.mxu0 %v465
  %610 = vmatprep.mubr.bf16.mxu0 %v179
  %611 = vmatmul.mubr.bf16.gmra.mrb[0].mxu0 %v178
  %v612 = vpop.f32.mrb[0].mxu0
  %v613 = vadd.f32 %v164, %v612
  %v614 = vpop.f32.mrb[0].mxu0
  %v615 = vpop.f32.mrb[0].mxu0
  %v616 = vpop.f32.mrb[0].mxu0
  %617 = vdwg.mxu0
  %618 = vmatprep.subr.bf16.mxu0 0
  %619 = vmatpush1.bf16.msra.mxu0 %v466
  %620 = vmatprep.subr.bf16.mxu0 0
  %621 = vmatpush1.bf16.msra.mxu0 %v467
  %622 = vmatprep.subr.bf16.mxu0 0
  %623 = vmatpush1.bf16.msra.mxu0 %v468
  %624 = vmatprep.subr.bf16.mxu0 0
  %625 = vmatpush1.bf16.msra.mxu0 %v469
  %626 = vmatprep.subr.bf16.mxu0 0
  %627 = vmatpush1.bf16.msra.mxu0 %v470
  %628 = vmatprep.subr.bf16.mxu0 0
  %629 = vmatpush1.bf16.msra.mxu0 %v471
  %630 = vmatprep.subr.bf16.mxu0 0
  %631 = vmatpush1.bf16.msra.mxu0 %v472
  %632 = vmatprep.subr.bf16.mxu0 0
  %633 = vmatpush1.bf16.msra.mxu0 %v473
  %634 = vmatprep.subr.bf16.mxu0 0
  %635 = vmatpush1.bf16.msra.mxu0 %v474
  %636 = vmatprep.subr.bf16.mxu0 0
  %637 = vmatpush1.bf16.msra.mxu0 %v475
  %638 = vmatprep.subr.bf16.mxu0 0
  %639 = vmatpush1.bf16.msra.mxu0 %v476
  %640 = vmatprep.subr.bf16.mxu0 0
  %641 = vmatpush1.bf16.msra.mxu0 %v477
  %642 = vmatprep.subr.bf16.mxu0 0
  %643 = vmatpush1.bf16.msra.mxu0 %v478
  %644 = vmatprep.subr.bf16.mxu0 0
  %645 = vmatpush1.bf16.msra.mxu0 %v479
  %646 = vmatprep.subr.bf16.mxu0 0
  %647 = vmatpush1.bf16.msra.mxu0 %v480
  %648 = vmatprep.subr.bf16.mxu0 0
  %649 = vmatpush1.bf16.msra.mxu0 %v481
  %650 = vmatprep.mubr.bf16.mxu0 %v181
  %651 = vmatmul.mubr.bf16.gmra.mrb[0].mxu0 %v180
  %v652 = vpop.f32.mrb[0].mxu0
  %v653 = vadd.f32 %v613, %v652
  %v654 = vpop.f32.mrb[0].mxu0
  %v655 = vpop.f32.mrb[0].mxu0
  %v656 = vpop.f32.mrb[0].mxu0
  %657 = vdwg.mxu0
  %658 = vmatprep.subr.bf16.mxu0 0
  %659 = vmatpush1.bf16.msra.mxu0 %v482
  %660 = vmatprep.subr.bf16.mxu0 0
  %661 = vmatpush1.bf16.msra.mxu0 %v483
  %662 = vmatprep.subr.bf16.mxu0 0
  %663 = vmatpush1.bf16.msra.mxu0 %v484
  %664 = vmatprep.subr.bf16.mxu0 0
  %665 = vmatpush1.bf16.msra.mxu0 %v485
  %666 = vmatprep.subr.bf16.mxu0 0
  %667 = vmatpush1.bf16.msra.mxu0 %v486
  %668 = vmatprep.subr.bf16.mxu0 0
  %669 = vmatpush1.bf16.msra.mxu0 %v487
  %670 = vmatprep.subr.bf16.mxu0 0
  %671 = vmatpush1.bf16.msra.mxu0 %v488
  %672 = vmatprep.subr.bf16.mxu0 0
  %673 = vmatpush1.bf16.msra.mxu0 %v489
  %674 = vmatprep.subr.bf16.mxu0 0
  %675 = vmatpush1.bf16.msra.mxu0 %v490
  %676 = vmatprep.subr.bf16.mxu0 0
  %677 = vmatpush1.bf16.msra.mxu0 %v491
  %678 = vmatprep.subr.bf16.mxu0 0
  %679 = vmatpush1.bf16.msra.mxu0 %v492
  %680 = vmatprep.subr.bf16.mxu0 0
  %681 = vmatpush1.bf16.msra.mxu0 %v493
  %682 = vmatprep.subr.bf16.mxu0 0
  %683 = vmatpush1.bf16.msra.mxu0 %v494
  %684 = vmatprep.subr.bf16.mxu0 0
  %685 = vmatpush1.bf16.msra.mxu0 %v495
  %686 = vmatprep.subr.bf16.mxu0 0
  %687 = vmatpush1.bf16.msra.mxu0 %v496
  %688 = vmatprep.subr.bf16.mxu0 0
  %689 = vmatpush1.bf16.msra.mxu0 %v497
  %690 = vmatprep.mubr.bf16.mxu0 %v183
  %691 = vmatmul.mubr.bf16.gmra.mrb[0].mxu0 %v182
  %v692 = vpop.f32.mrb[0].mxu0
  %v693 = vadd.f32 %v653, %v692
  %v694 = vpop.f32.mrb[0].mxu0
  %v695 = vpop.f32.mrb[0].mxu0
  %v696 = vpop.f32.mrb[0].mxu0
  %697 = vdwg.mxu0
  %698 = vmatprep.subr.bf16.mxu0 0
  %699 = vmatpush1.bf16.msra.mxu0 %v498
  %700 = vmatprep.subr.bf16.mxu0 0
  %701 = vmatpush1.bf16.msra.mxu0 %v499
  %702 = vmatprep.subr.bf16.mxu0 0
  %703 = vmatpush1.bf16.msra.mxu0 %v500
  %704 = vmatprep.subr.bf16.mxu0 0
  %705 = vmatpush1.bf16.msra.mxu0 %v501
  %706 = vmatprep.subr.bf16.mxu0 0
  %707 = vmatpush1.bf16.msra.mxu0 %v502
  %708 = vmatprep.subr.bf16.mxu0 0
  %709 = vmatpush1.bf16.msra.mxu0 %v503
  %710 = vmatprep.subr.bf16.mxu0 0
  %711 = vmatpush1.bf16.msra.mxu0 %v504
  %712 = vmatprep.subr.bf16.mxu0 0
  %713 = vmatpush1.bf16.msra.mxu0 %v505
  %714 = vmatprep.subr.bf16.mxu0 0
  %715 = vmatpush1.bf16.msra.mxu0 %v506
  %716 = vmatprep.subr.bf16.mxu0 0
  %717 = vmatpush1.bf16.msra.mxu0 %v507
  %718 = vmatprep.subr.bf16.mxu0 0
  %719 = vmatpush1.bf16.msra.mxu0 %v508
  %720 = vmatprep.subr.bf16.mxu0 0
  %721 = vmatpush1.bf16.msra.mxu0 %v509
  %722 = vmatprep.subr.bf16.mxu0 0
  %723 = vmatpush1.bf16.msra.mxu0 %v510
  %724 = vmatprep.subr.bf16.mxu0 0
  %725 = vmatpush1.bf16.msra.mxu0 %v511
  %726 = vmatprep.subr.bf16.mxu0 0
  %727 = vmatpush1.bf16.msra.mxu0 %v512
  %728 = vmatprep.subr.bf16.mxu0 0
  %729 = vmatpush1.bf16.msra.mxu0 %v513
  %730 = vmatprep.mubr.bf16.mxu0 %v185
  %731 = vmatmul.mubr.bf16.gmra.mrb[0].mxu0 %v184
  %v732 = vpop.f32.mrb[0].mxu0
  %v733 = vadd.f32 %v693, %v732
  %v734 = vpop.f32.mrb[0].mxu0
  %v735 = vpop.f32.mrb[0].mxu0
  %v736 = vpop.f32.mrb[0].mxu0
  %737 = vdwg.mxu0
  %v738 = vmax.f32 %v733, 0.0
  %v739 = vpack.c.bf16 %v738, %v738
  %v740 = vld [vmem:[%s3] sm:$0xf]
  %v741 = vld [vmem:[%s3 + $0x4] sm:$0xf]
  %v742 = vld [vmem:[%s3 + $0x8] sm:$0xf]
  %v743 = vld [vmem:[%s3 + $0xc] sm:$0xf]
  %v744 = vld [vmem:[%s3 + $0x10] sm:$0xf]
  %v745 = vld [vmem:[%s3 + $0x14] sm:$0xf]
  %v746 = vld [vmem:[%s3 + $0x18] sm:$0xf]
  %v747 = vld [vmem:[%s3 + $0x1c] sm:$0xf]
  %v748 = vld [vmem:[%s3 + $0x20] sm:$0xf]
  %v749 = vld [vmem:[%s3 + $0x24] sm:$0xf]
  %v750 = vld [vmem:[%s3 + $0x28] sm:$0xf]
  %v751 = vld [vmem:[%s3 + $0x2c] sm:$0xf]
  %v752 = vld [vmem:[%s3 + $0x30] sm:$0xf]
  %v753 = vld [vmem:[%s3 + $0x34] sm:$0xf]
  %v754 = vld [vmem:[%s3 + $0x38] sm:$0xf]
  %v755 = vld [vmem:[%s3 + $0x3c] sm:$0xf]
  %v756 = vld [vmem:[%s4] sm:$0x1]
  %v758 = vlaneseq
  %v759 = vshrl.u32 %v758, 7
  %v760 = vsub.s32 0, %v759
  %v761 = vrot.slane %v756, %v760
  %v779 = vunpack.c.l.b16 %v740
  %v780 = vunpack.c.l.b16 %v741
  %v781 = vunpack.c.l.b16 %v742
  %v782 = vunpack.c.l.b16 %v743
  %v783 = vunpack.c.l.b16 %v744
  %v784 = vunpack.c.l.b16 %v745
  %v785 = vunpack.c.l.b16 %v746
  %v786 = vunpack.c.l.b16 %v747
  %v787 = vunpack.c.l.b16 %v748
  %v788 = vunpack.c.l.b16 %v749
  %v789 = vunpack.c.l.b16 %v750
  %v790 = vunpack.c.l.b16 %v751
  %v791 = vunpack.c.l.b16 %v752
  %v792 = vunpack.c.l.b16 %v753
  %v793 = vunpack.c.l.b16 %v754
  %v794 = vunpack.c.l.b16 %v755
  %v795 = vpack.c.b16 %v780, %v779
  %v796 = vpack.c.b16 %v782, %v781
  %v797 = vpack.c.b16 %v784, %v783
  %v798 = vpack.c.b16 %v786, %v785
  %v799 = vpack.c.b16 %v788, %v787
  %v800 = vpack.c.b16 %v790, %v789
  %v801 = vpack.c.b16 %v792, %v791
  %v802 = vpack.c.b16 %v794, %v793
  %811 = vmatprep.subr.bf16.mxu0 0
  %812 = vmatpush1.bf16.msra.mxu0 %v795
  %813 = vmatprep.subr.bf16.mxu0 0
  %814 = vmatpush1.bf16.msra.mxu0 %v796
  %815 = vmatprep.subr.bf16.mxu0 0
  %816 = vmatpush1.bf16.msra.mxu0 %v797
  %817 = vmatprep.subr.bf16.mxu0 0
  %818 = vmatpush1.bf16.msra.mxu0 %v798
  %819 = vmatprep.subr.bf16.mxu0 0
  %820 = vmatpush1.bf16.msra.mxu0 %v799
  %821 = vmatprep.subr.bf16.mxu0 0
  %822 = vmatpush1.bf16.msra.mxu0 %v800
  %823 = vmatprep.subr.bf16.mxu0 0
  %824 = vmatpush1.bf16.msra.mxu0 %v801
  %825 = vmatprep.subr.bf16.mxu0 0
  %826 = vmatpush1.bf16.msra.mxu0 %v802
  %827 = vmatprep.subr.bf16.mxu0 0
  %828 = vmatpush1.bf16.msra.mxu0 0
  %829 = vmatprep.subr.bf16.mxu0 0
  %830 = vmatpush1.bf16.msra.mxu0 0
  %831 = vmatprep.subr.bf16.mxu0 0
  %832 = vmatpush1.bf16.msra.mxu0 0
  %833 = vmatprep.subr.bf16.mxu0 0
  %834 = vmatpush1.bf16.msra.mxu0 0
  %835 = vmatprep.subr.bf16.mxu0 0
  %836 = vmatpush1.bf16.msra.mxu0 0
  %837 = vmatprep.subr.bf16.mxu0 0
  %838 = vmatpush1.bf16.msra.mxu0 0
  %839 = vmatprep.subr.bf16.mxu0 0
  %840 = vmatpush1.bf16.msra.mxu0 0
  %841 = vmatprep.subr.bf16.mxu0 0
  %842 = vmatpush1.bf16.msra.mxu0 0
  %843 = vmatprep.mubr.bf16.mxu0 0
  %844 = vmatmul.mubr.bf16.gmra.mrb[0].mxu0 %v739
  %v845 = vpop.f32.mrb[0].mxu0
  %v846 = vadd.f32 %v761, %v845
  %v847 = vpop.f32.mrb[0].mxu0
  %v848 = vpop.f32.mrb[0].mxu0
  %v849 = vpop.f32.mrb[0].mxu0
  %850 = vdwg.mxu0
  %v851 = vmax.f32 %v846, 0.0
  %v852 = vpack.c.bf16 %v851, %v851
  %v853 = vld [vmem:[%s5] sm:$0xf]
  %v854 = vld [vmem:[%s5 + $0x4] sm:$0xf]
  %v855 = vld [vmem:[%s5 + $0x8] sm:$0xf]
  %v856 = vld [vmem:[%s5 + $0xc] sm:$0xf]
  %v857 = vld [vmem:[%s5 + $0x10] sm:$0xf]
  %v858 = vld [vmem:[%s5 + $0x14] sm:$0xf]
  %v859 = vld [vmem:[%s5 + $0x18] sm:$0xf]
  %v860 = vld [vmem:[%s5 + $0x1c] sm:$0xf]
  %v861 = vld [vmem:[%s5 + $0x20] sm:$0xf]
  %v862 = vld [vmem:[%s5 + $0x24] sm:$0xf]
  %v863 = vld [vmem:[%s5 + $0x28] sm:$0xf]
  %v864 = vld [vmem:[%s5 + $0x2c] sm:$0xf]
  %v865 = vld [vmem:[%s5 + $0x30] sm:$0xf]
  %v866 = vld [vmem:[%s5 + $0x34] sm:$0xf]
  %v867 = vld [vmem:[%s5 + $0x38] sm:$0xf]
  %v868 = vld [vmem:[%s5 + $0x3c] sm:$0xf]
  %v869 = vld [vmem:[%s6] sm:$0x1]
  %v871 = vlaneseq
  %v872 = vshrl.u32 %v871, 7
  %v873 = vsub.s32 0, %v872
  %v874 = vrot.slane %v869, %v873
  %v892 = vunpack.c.l.b16 %v853
  %v893 = vunpack.c.l.b16 %v854
  %v894 = vunpack.c.l.b16 %v855
  %v895 = vunpack.c.l.b16 %v856
  %v896 = vunpack.c.l.b16 %v857
  %v897 = vunpack.c.l.b16 %v858
  %v898 = vunpack.c.l.b16 %v859
  %v899 = vunpack.c.l.b16 %v860
  %v900 = vunpack.c.l.b16 %v861
  %v901 = vunpack.c.l.b16 %v862
  %v902 = vunpack.c.l.b16 %v863
  %v903 = vunpack.c.l.b16 %v864
  %v904 = vunpack.c.l.b16 %v865
  %v905 = vunpack.c.l.b16 %v866
  %v906 = vunpack.c.l.b16 %v867
  %v907 = vunpack.c.l.b16 %v868
  %v908 = vpack.c.b16 %v893, %v892
  %v909 = vpack.c.b16 %v895, %v894
  %v910 = vpack.c.b16 %v897, %v896
  %v911 = vpack.c.b16 %v899, %v898
  %v912 = vpack.c.b16 %v901, %v900
  %v913 = vpack.c.b16 %v903, %v902
  %v914 = vpack.c.b16 %v905, %v904
  %v915 = vpack.c.b16 %v907, %v906
  %924 = vmatprep.subr.bf16.mxu0 0
  %925 = vmatpush1.bf16.msra.mxu0 %v908
  %926 = vmatprep.subr.bf16.mxu0 0
  %927 = vmatpush1.bf16.msra.mxu0 %v909
  %928 = vmatprep.subr.bf16.mxu0 0
  %929 = vmatpush1.bf16.msra.mxu0 %v910
  %930 = vmatprep.subr.bf16.mxu0 0
  %931 = vmatpush1.bf16.msra.mxu0 %v911
  %932 = vmatprep.subr.bf16.mxu0 0
  %933 = vmatpush1.bf16.msra.mxu0 %v912
  %934 = vmatprep.subr.bf16.mxu0 0
  %935 = vmatpush1.bf16.msra.mxu0 %v913
  %936 = vmatprep.subr.bf16.mxu0 0
  %937 = vmatpush1.bf16.msra.mxu0 %v914
  %938 = vmatprep.subr.bf16.mxu0 0
  %939 = vmatpush1.bf16.msra.mxu0 %v915
  %940 = vmatprep.subr.bf16.mxu0 0
  %941 = vmatpush1.bf16.msra.mxu0 0
  %942 = vmatprep.subr.bf16.mxu0 0
  %943 = vmatpush1.bf16.msra.mxu0 0
  %944 = vmatprep.subr.bf16.mxu0 0
  %945 = vmatpush1.bf16.msra.mxu0 0
  %946 = vmatprep.subr.bf16.mxu0 0
  %947 = vmatpush1.bf16.msra.mxu0 0
  %948 = vmatprep.subr.bf16.mxu0 0
  %949 = vmatpush1.bf16.msra.mxu0 0
  %950 = vmatprep.subr.bf16.mxu0 0
  %951 = vmatpush1.bf16.msra.mxu0 0
  %952 = vmatprep.subr.bf16.mxu0 0
  %953 = vmatpush1.bf16.msra.mxu0 0
  %954 = vmatprep.subr.bf16.mxu0 0
  %955 = vmatpush1.bf16.msra.mxu0 0
  %956 = vmatprep.mubr.bf16.mxu0 0
  %957 = vmatmul.mubr.bf16.gmra.mrb[0].mxu0 %v852
  %v958 = vpop.f32.mrb[0].mxu0
  %v959 = vadd.f32 %v874, %v958
  %v960 = vpop.f32.mrb[0].mxu0
  %v961 = vpop.f32.mrb[0].mxu0
  %v962 = vpop.f32.mrb[0].mxu0
  %963 = vdwg.mxu0
  %964 = vst [vmem:[%s7] sm:$0xff] %v959
  // Predicated region
  $region30: #{mlp_forward.1} parent=0 // pred_check
    _
  $region31: #{mlp_forward.1} parent=0 // pred_check_branch
    %966 = sbr.rel (0) target = $region33
  $region32: #{mlp_forward.1} parent=0 // pred_region
    _
  $region33: #{mlp_forward.1} parent=0 // pred_fallthru
    _
  // Predicated region
  $region34: #{mlp_forward.1} parent=0 // pred_check
    _
  $region35: #{mlp_forward.1} parent=0 // pred_check_branch
    %968 = sbr.rel (0) target = $region37
  $region36: #{mlp_forward.1} parent=0 // pred_region
    _
  $region37: #{mlp_forward.1} parent=0 // pred_fallthru
    _

</llo_original>
